<compile_context>
chip_gen: v5e
topology: v5e:2x2
jax: 0.10.0
libtpu: 0.0.40
codegen_flags: <defaults>
</compile_context>

<pallas_src>
import functools

import jax
import jax.numpy as jnp
from jax.experimental import pallas as pl
from jax.experimental.pallas import tpu as pltpu


def _sem_head_multi_kernel(pooled_ref, w1_ref, b1_ref, w2_ref, b2_ref, out_ref,
                           *, num_heads, kp):
    # pooled_ref: (tn, C)            bf16  pooled features for this batch tile
    # w1_ref    : (C, H*HID)         bf16  all heads' first Linear, fused on lanes
    # b1_ref    : (1, H*HID)         f32
    # w2_ref    : (H*HID, H*Kp)      bf16  block-diagonal second Linear
    # b2_ref    : (1, H*Kp)          f32   (-1e30 in padded cluster columns)
    # out_ref   : (H, tn, Kp)        f32   per-head softmax cluster scores

    # Layer 1, all heads fused: one MXU matmul, f32 accumulation.
    h = jnp.dot(pooled_ref[...], w1_ref[...], preferred_element_type=jnp.float32)
    h = jnp.maximum(h + b1_ref[...], 0.0)                     # (tn, H*HID) f32
    h = h.astype(w1_ref.dtype)

    # Layer 2, all heads fused via block-diagonal weights: one MXU matmul
    # (192-deep contraction, 384-wide output) instead of H small ones.
    logits = jnp.dot(h, w2_ref[...], preferred_element_type=jnp.float32)
    logits = logits + b2_ref[...]                              # (tn, H*Kp) f32

    # Per-head softmax on lane-ALIGNED 128-wide segments, unrolled (H static).
    for head in range(num_heads):
        lg = logits[:, head * kp:(head + 1) * kp]              # (tn, Kp), offset = head*128
        m = jnp.max(lg, axis=-1, keepdims=True)
        e = jnp.exp(lg - m)                                    # padded cols underflow to 0
        probs = e / jnp.sum(e, axis=-1, keepdims=True)         # exact normalization
        out_ref[head] = probs.astype(out_ref.dtype)            # lane-dense store


def _pick_batch_tile(n, *, min_steps=2, cap=1024):
    """Largest multiple-of-8 tile dividing N, preferring >= min_steps grid
    steps (so v7x's 2 TensorCores both get work) and capped to amortize the
    ~0.35us per-grid-step pipeline overhead at large N."""
    if n % 8 != 0:
        return n                                   # single full block
    divisors = [t for t in range(8, min(n, cap) + 1, 8) if n % t == 0]
    if not divisors:
        return n
    multi = [t for t in divisors if n // t >= min_steps]
    return max(multi) if multi else max(divisors)


def sem_head_multi_forward(x_nchw, w1, b1, w2, b2, *, mxu_dtype=jnp.bfloat16):
    """Runs all heads; returns list of (N, num_cluster) softmax score arrays.

    x_nchw : (N, C, H, W) float32  shared conv features (single-tensor path)
    w1     : (num_heads, C, HID)
    b1     : (num_heads, HID)
    w2     : (num_heads, HID, K)
    b2     : (num_heads, K)
    """
    N, C, H, W = x_nchw.shape
    num_heads, c_w, HID = w1.shape
    assert c_w == C
    K = w2.shape[-1]

    # adaptive_avg_pool2d(x, 1).flatten(1): head-independent -> pool once in
    # the wrapper (mean accumulated in f32), then cast once to bf16 so the
    # kernel's only grid-varying input DMA is half-width.
    # (Fusing the pooling in-kernel only pays off when C*H*W per row is small
    #  enough for VMEM; for ResNet-scale features keep it here.)
    pooled = jnp.mean(x_nchw.astype(jnp.float32), axis=(2, 3)).astype(mxu_dtype)

    # Fuse all heads' first Linear along the lane axis: (C, num_heads*HID).
    w1f = jnp.transpose(w1, (1, 0, 2)).reshape(C, num_heads * HID).astype(mxu_dtype)
    b1f = b1.astype(jnp.float32).reshape(1, num_heads * HID)

    # Block-diagonal second Linear.  Cluster dim padded to Kp=128 per head so
    # per-head logit segments and output stores are lane-aligned/lane-dense;
    # padded columns get a -1e30 bias so they carry zero probability mass.
    Kp = ((K + 127) // 128) * 128
    w2bd = jnp.zeros((num_heads * HID, num_heads * Kp), dtype=jnp.float32)
    b2f = jnp.full((1, num_heads * Kp), -1e30, dtype=jnp.float32)
    for h in range(num_heads):
        w2bd = w2bd.at[h * HID:(h + 1) * HID, h * Kp:h * Kp + K].set(
            w2[h].astype(jnp.float32))
        b2f = b2f.at[0, h * Kp:h * Kp + K].set(b2[h].astype(jnp.float32))
    w2bd = w2bd.astype(mxu_dtype)

    tn = _pick_batch_tile(N)
    grid = (N // tn,) if N % tn == 0 else (1,)

    cost = pl.CostEstimate(
        flops=2 * N * C * (num_heads * HID)
              + 2 * N * (num_heads * HID) * (num_heads * Kp),
        transcendentals=N * num_heads * Kp,
        bytes_accessed=N * C * 2                               # pooled (bf16)
                       + C * num_heads * HID * 2               # w1 (bf16)
                       + num_heads * HID * 4                   # b1 (f32)
                       + (num_heads * HID) * (num_heads * Kp) * 2  # w2bd (bf16)
                       + num_heads * Kp * 4                    # b2 (f32)
                       + num_heads * N * Kp * 4,               # out (f32)
    )

    kernel = functools.partial(_sem_head_multi_kernel, num_heads=num_heads, kp=Kp)

    out = pl.pallas_call(
        kernel,
        out_shape=jax.ShapeDtypeStruct((num_heads, N, Kp), jnp.float32),
        grid_spec=pltpu.PrefetchScalarGridSpec(
            num_scalar_prefetch=0,
            grid=grid,
            in_specs=[
                pl.BlockSpec((tn, C), lambda i: (i, 0)),                       # pooled tile
                pl.BlockSpec((C, num_heads * HID), lambda i: (0, 0)),          # fused W1
                pl.BlockSpec((1, num_heads * HID), lambda i: (0, 0)),          # fused b1
                pl.BlockSpec((num_heads * HID, num_heads * Kp),
                             lambda i: (0, 0)),                                # block-diag W2
                pl.BlockSpec((1, num_heads * Kp), lambda i: (0, 0)),           # padded b2
            ],
            out_specs=pl.BlockSpec((num_heads, tn, Kp), lambda i: (0, i, 0)),
        ),
        compiler_params=pltpu.CompilerParams(
            dimension_semantics=("parallel",),   # batch tiles -> both TCs on v7x
        ),
        cost_estimate=cost,
    )(pooled, w1f, b1f, w2bd, b2f)

    # ONE slice of the padded output, then split into the python list the
    # PyTorch module's forward() returns.
    scores = out[:, :, :K]
    return [scores[h] for h in range(num_heads)]


def _reference_forward(x_nchw, w1, b1, w2, b2):
    pooled = jnp.mean(x_nchw, axis=(2, 3))   # adaptive_avg_pool2d(x, 1).flatten(1)
    outs = []
    for h in range(w1.shape[0]):
        a = jnp.maximum(pooled @ w1[h] + b1[h], 0.0)
        logits = a @ w2[h] + b2[h]
        outs.append(jax.nn.softmax(logits, axis=1))
    return outs


if __name__ == "__main__":
    # SemHeadMulti(multi_heads=[...]) with num_heads=3, num_cluster=10.
    NUM_HEADS = 3
    NUM_CLUSTER = 10
    N, C, H, W = 16, 32, 8, 8     # small NCHW conv feature map (grid=(2,))
    HID = 64                      # hidden width of each head's MLP classifier

    key = jax.random.PRNGKey(0)
    kx, k1, k2, k3, k4 = jax.random.split(key, 5)

    x = jax.random.normal(kx, (N, C, H, W), dtype=jnp.float32)
    w1 = 0.1 * jax.random.normal(k1, (NUM_HEADS, C, HID), dtype=jnp.float32)
    b1 = 0.1 * jax.random.normal(k2, (NUM_HEADS, HID), dtype=jnp.float32)
    w2 = 0.1 * jax.random.normal(k3, (NUM_HEADS, HID, NUM_CLUSTER), dtype=jnp.float32)
    b2 = 0.1 * jax.random.normal(k4, (NUM_HEADS, NUM_CLUSTER), dtype=jnp.float32)

    scores = sem_head_multi_forward(x, w1, b1, w2, b2)
    scores = [jax.block_until_ready(s) for s in scores]

    ref = _reference_forward(x, w1, b1, w2, b2)
    for s, r in zip(scores, ref):
        assert s.shape == (N, NUM_CLUSTER)
        # bf16 MXU operands (f32 accumulation) -> loose tolerance vs f32 ref.
        if not jnp.allclose(s, r, atol=5e-3, rtol=1e-3):
            raise AssertionError("Pallas output mismatch vs reference")

    # TODO(synk): local_consistency / compute_cluster_proto / select_samples use
    # topk, sorting and host-side numpy shuffling (data-dependent selection);
    # only the forward() hot path is implemented as a kernel.  The per-head
    # feature-list input path of forward() is likewise left to the caller.
    print("KERNEL_OK")
</pallas_src>

<mosaic_0001>
module attributes {stable_mosaic.version = 11 : i64} {
  func.func @_sem_head_multi_kernel(%arg0: i32, %arg1: memref<8x32xbf16, #tpu.memory_space<vmem>>, %arg2: memref<32x192xbf16, #tpu.memory_space<vmem>>, %arg3: memref<1x192xf32, #tpu.memory_space<vmem>>, %arg4: memref<192x384xbf16, #tpu.memory_space<vmem>>, %arg5: memref<1x384xf32, #tpu.memory_space<vmem>>, %arg6: memref<3x8x128xf32, #tpu.memory_space<vmem>>) attributes {dimension_semantics = [#tpu.dimension_semantics<parallel>], iteration_bounds = array<i64: 2>, scalar_prefetch = 0 : i64, scratch_operands = 0 : i64, tpu.core_type = #tpu.core_type<tc>, window_params = [{transform_indices = @transform_0, window_bounds = array<i64: 8, 32>}, {pipeline_mode = #tpu.pipeline_mode<synchronous>, transform_indices = @transform_1, window_bounds = array<i64: 32, 192>}, {pipeline_mode = #tpu.pipeline_mode<synchronous>, transform_indices = @transform_2, window_bounds = array<i64: 1, 192>}, {pipeline_mode = #tpu.pipeline_mode<synchronous>, transform_indices = @transform_3, window_bounds = array<i64: 192, 384>}, {pipeline_mode = #tpu.pipeline_mode<synchronous>, transform_indices = @transform_4, window_bounds = array<i64: 1, 384>}, {transform_indices = @transform_5, window_bounds = array<i64: 3, 8, 128>}]} {
    %c0 = arith.constant 0 : index
    %c0_0 = arith.constant 0 : index
    %0 = vector.load %arg1[%c0, %c0_0] : memref<8x32xbf16, #tpu.memory_space<vmem>>, vector<8x32xbf16>
    %c0_1 = arith.constant 0 : index
    %c0_2 = arith.constant 0 : index
    %1 = vector.load %arg2[%c0_1, %c0_2] : memref<32x192xbf16, #tpu.memory_space<vmem>>, vector<32x192xbf16>
    %cst = arith.constant dense<0.000000e+00> : vector<8x192xf32>
    %2 = tpu.matmul %0, %1, %cst {dimension_numbers = #tpu.dot_dimension_numbers<[1], [0], [0], [1], [0, 0, 1, 1], [], []>} : vector<8x32xbf16>, vector<32x192xbf16>, vector<8x192xf32> -> vector<8x192xf32>
    %c0_3 = arith.constant 0 : index
    %c0_4 = arith.constant 0 : index
    %3 = vector.load %arg3[%c0_3, %c0_4] : memref<1x192xf32, #tpu.memory_space<vmem>>, vector<1x192xf32>
    %4 = vector.broadcast %3 : vector<1x192xf32> to vector<8x192xf32>
    %5 = arith.addf %2, %4 : vector<8x192xf32>
    %cst_5 = arith.constant 0.000000e+00 : f32
    %6 = vector.broadcast %cst_5 : f32 to vector<8x192xf32>
    %7 = arith.maximumf %5, %6 : vector<8x192xf32>
    %8 = arith.truncf %7 : vector<8x192xf32> to vector<8x192xbf16>
    %c0_6 = arith.constant 0 : index
    %c0_7 = arith.constant 0 : index
    %9 = vector.load %arg4[%c0_6, %c0_7] : memref<192x384xbf16, #tpu.memory_space<vmem>>, vector<192x384xbf16>
    %cst_8 = arith.constant dense<0.000000e+00> : vector<8x384xf32>
    %10 = tpu.matmul %8, %9, %cst_8 {dimension_numbers = #tpu.dot_dimension_numbers<[1], [0], [0], [1], [0, 0, 1, 1], [], []>} : vector<8x192xbf16>, vector<192x384xbf16>, vector<8x384xf32> -> vector<8x384xf32>
    %c0_9 = arith.constant 0 : index
    %c0_10 = arith.constant 0 : index
    %11 = vector.load %arg5[%c0_9, %c0_10] : memref<1x384xf32, #tpu.memory_space<vmem>>, vector<1x384xf32>
    %12 = vector.broadcast %11 : vector<1x384xf32> to vector<8x384xf32>
    %13 = arith.addf %10, %12 : vector<8x384xf32>
    %14 = vector.extract_strided_slice %13 {offsets = [0, 0], sizes = [8, 128], strides = [1, 1]} : vector<8x384xf32> to vector<8x128xf32>
    %cst_11 = arith.constant dense<0xFF800000> : vector<8xf32>
    %15 = vector.multi_reduction <maximumf>, %14, %cst_11 [1] : vector<8x128xf32> to vector<8xf32>
    %16 = vector.shape_cast %15 : vector<8xf32> to vector<8x1xf32>
    %17 = vector.broadcast %16 : vector<8x1xf32> to vector<8x128xf32>
    %18 = arith.subf %14, %17 : vector<8x128xf32>
    %19 = math.exp %18 : vector<8x128xf32>
    %cst_12 = arith.constant dense<0.000000e+00> : vector<8xf32>
    %20 = vector.multi_reduction <add>, %19, %cst_12 [1] : vector<8x128xf32> to vector<8xf32>
    %21 = vector.shape_cast %20 : vector<8xf32> to vector<8x1xf32>
    %22 = vector.broadcast %21 : vector<8x1xf32> to vector<8x128xf32>
    %23 = arith.divf %19, %22 : vector<8x128xf32>
    %c0_13 = arith.constant 0 : index
    %c0_14 = arith.constant 0 : index
    %c0_15 = arith.constant 0 : index
    %24 = vector.load %arg6[%c0_13, %c0_14, %c0_15] : memref<3x8x128xf32, #tpu.memory_space<vmem>>, vector<1x8x128xf32>
    %25 = vector.shape_cast %24 : vector<1x8x128xf32> to vector<8x128xf32>
    %26 = vector.shape_cast %23 : vector<8x128xf32> to vector<1x8x128xf32>
    tpu.vector_store %arg6[%c0_13, %c0_14, %c0_15], %26 {strides = array<i32>} : memref<3x8x128xf32, #tpu.memory_space<vmem>>, vector<1x8x128xf32>,
    %27 = vector.extract_strided_slice %13 {offsets = [0, 128], sizes = [8, 128], strides = [1, 1]} : vector<8x384xf32> to vector<8x128xf32>
    %cst_16 = arith.constant dense<0xFF800000> : vector<8xf32>
    %28 = vector.multi_reduction <maximumf>, %27, %cst_16 [1] : vector<8x128xf32> to vector<8xf32>
    %29 = vector.shape_cast %28 : vector<8xf32> to vector<8x1xf32>
    %30 = vector.broadcast %29 : vector<8x1xf32> to vector<8x128xf32>
    %31 = arith.subf %27, %30 : vector<8x128xf32>
    %32 = math.exp %31 : vector<8x128xf32>
    %cst_17 = arith.constant dense<0.000000e+00> : vector<8xf32>
    %33 = vector.multi_reduction <add>, %32, %cst_17 [1] : vector<8x128xf32> to vector<8xf32>
    %34 = vector.shape_cast %33 : vector<8xf32> to vector<8x1xf32>
    %35 = vector.broadcast %34 : vector<8x1xf32> to vector<8x128xf32>
    %36 = arith.divf %32, %35 : vector<8x128xf32>
    %c1 = arith.constant 1 : index
    %c0_18 = arith.constant 0 : index
    %c0_19 = arith.constant 0 : index
    %37 = vector.load %arg6[%c1, %c0_18, %c0_19] : memref<3x8x128xf32, #tpu.memory_space<vmem>>, vector<1x8x128xf32>
    %38 = vector.shape_cast %37 : vector<1x8x128xf32> to vector<8x128xf32>
    %39 = vector.shape_cast %36 : vector<8x128xf32> to vector<1x8x128xf32>
    tpu.vector_store %arg6[%c1, %c0_18, %c0_19], %39 {strides = array<i32>} : memref<3x8x128xf32, #tpu.memory_space<vmem>>, vector<1x8x128xf32>,
    %40 = vector.extract_strided_slice %13 {offsets = [0, 256], sizes = [8, 128], strides = [1, 1]} : vector<8x384xf32> to vector<8x128xf32>
    %cst_20 = arith.constant dense<0xFF800000> : vector<8xf32>
    %41 = vector.multi_reduction <maximumf>, %40, %cst_20 [1] : vector<8x128xf32> to vector<8xf32>
    %42 = vector.shape_cast %41 : vector<8xf32> to vector<8x1xf32>
    %43 = vector.broadcast %42 : vector<8x1xf32> to vector<8x128xf32>
    %44 = arith.subf %40, %43 : vector<8x128xf32>
    %45 = math.exp %44 : vector<8x128xf32>
    %cst_21 = arith.constant dense<0.000000e+00> : vector<8xf32>
    %46 = vector.multi_reduction <add>, %45, %cst_21 [1] : vector<8x128xf32> to vector<8xf32>
    %47 = vector.shape_cast %46 : vector<8xf32> to vector<8x1xf32>
    %48 = vector.broadcast %47 : vector<8x1xf32> to vector<8x128xf32>
    %49 = arith.divf %45, %48 : vector<8x128xf32>
    %c2 = arith.constant 2 : index
    %c0_22 = arith.constant 0 : index
    %c0_23 = arith.constant 0 : index
    %50 = vector.load %arg6[%c2, %c0_22, %c0_23] : memref<3x8x128xf32, #tpu.memory_space<vmem>>, vector<1x8x128xf32>
    %51 = vector.shape_cast %50 : vector<1x8x128xf32> to vector<8x128xf32>
    %52 = vector.shape_cast %49 : vector<8x128xf32> to vector<1x8x128xf32>
    tpu.vector_store %arg6[%c2, %c0_22, %c0_23], %52 {strides = array<i32>} : memref<3x8x128xf32, #tpu.memory_space<vmem>>, vector<1x8x128xf32>,
    return
  }
  func.func @transform_0(%arg0: i32) -> (i32, i32) {
    %c0_i32 = arith.constant 0 : i32
    %c0_i32_0 = arith.constant 0 : i32
    return %arg0, %c0_i32 : i32, i32
  }
  func.func @transform_1(%arg0: i32) -> (i32, i32) {
    %c0_i32 = arith.constant 0 : i32
    %c0_i32_0 = arith.constant 0 : i32
    %c0_i32_1 = arith.constant 0 : i32
    return %c0_i32, %c0_i32_0 : i32, i32
  }
  func.func @transform_2(%arg0: i32) -> (i32, i32) {
    %c0_i32 = arith.constant 0 : i32
    %c0_i32_0 = arith.constant 0 : i32
    %c0_i32_1 = arith.constant 0 : i32
    return %c0_i32, %c0_i32_0 : i32, i32
  }
  func.func @transform_3(%arg0: i32) -> (i32, i32) {
    %c0_i32 = arith.constant 0 : i32
    %c0_i32_0 = arith.constant 0 : i32
    %c0_i32_1 = arith.constant 0 : i32
    return %c0_i32, %c0_i32_0 : i32, i32
  }
  func.func @transform_4(%arg0: i32) -> (i32, i32) {
    %c0_i32 = arith.constant 0 : i32
    %c0_i32_0 = arith.constant 0 : i32
    %c0_i32_1 = arith.constant 0 : i32
    return %c0_i32, %c0_i32_0 : i32, i32
  }
  func.func @transform_5(%arg0: i32) -> (i32, i32, i32) {
    %c0_i32 = arith.constant 0 : i32
    %c0_i32_0 = arith.constant 0 : i32
    %c0_i32_1 = arith.constant 0 : i32
    return %c0_i32, %arg0, %c0_i32_0 : i32, i32, i32
  }
}

</mosaic_0001>

<llo_original>
// kernel: tpu_custom_call.1
$region0: #{tpu_custom_call.1}
  #allocation0 [shape = 'u32[]', space=smem, size = 0x4, offset = 0x4, fixed_abs, tag = 'smem constant byte address 0x4 - core index']
  #allocation1 [shape = 'u32[72,128]{1,0:T(1,128)}', space=vmem, size = 0x9000, scoped, tag = 'internal scratch']
  %s0 = inlined_call_operand.hbm [shape: bf16[16,32], index: 0, kind: input, shape index: {}]
  %s1 = inlined_call_operand.hbm [shape: bf16[32,192], index: 1, kind: input, shape index: {}]
  %s2 = inlined_call_operand.hbm [shape: f32[1,192], index: 2, kind: input, shape index: {}]
  %s3 = inlined_call_operand.hbm [shape: bf16[192,384], index: 3, kind: input, shape index: {}]
  %s4 = inlined_call_operand.vmem [shape: f32[1,384], index: 4, kind: input, shape index: {}]
  %s5 = inlined_call_operand.hbm [shape: f32[3,16,128], index: 5, kind: output, shape index: {}]
  %s6 = sld [smem:[#allocation0]]
  $region69: #{tpu_custom_call.1} parent=0
    _
  %s8 = ssub.s32 1, %s6
  %s9 = scalar_select 0, %s8, %s6
  $region1: #{tpu_custom_call.1} parent=0
    #allocation2 [shape = 'u8[4096]{0}', space=vmem, size = 0x1000, scoped, tag = 'input window, operand 0']
    #allocation3 [shape = 's32[2]{0}', space=sflag, size = 0x8, scoped, tag = 'scoped memory for tpu_custom_call.1']
    #allocation4 [shape = 's32[2]{0}', space=sflag, size = 0x8, scoped, tag = 'scoped memory for tpu_custom_call.1']
    #allocation5 [shape = 'u8[16384]{0}', space=vmem, size = 0x4000, scoped, tag = 'input window, operand 1, single buffered']
    #allocation6 [shape = 's32[1]{0}', space=sflag, size = 0x4, scoped, tag = 'scoped memory for tpu_custom_call.1']
    #allocation7 [shape = 'u8[1024]{0}', space=vmem, size = 0x400, scoped, tag = 'input window, operand 2, single buffered']
    #allocation8 [shape = 'u8[147456]{0}', space=vmem, size = 0x24000, scoped, tag = 'input window, operand 3, single buffered']
    #allocation9 [shape = 's32[1]{0}', space=sflag, size = 0x4, scoped, tag = 'scoped memory for tpu_custom_call.1']
    #allocation10 [shape = 'u8[24576]{0}', space=vmem, size = 0x6000, scoped, tag = 'output window, operand 0']
    %10 = vsyncpa [#allocation3], 0
    %s11 = scalar_lea.sflag [#allocation3], 1
    %12 = vsyncpa %s11, 0
    %13 = vsyncpa [#allocation6], 0
    %14 = vsyncpa [#allocation9], 0
    %15 = vsyncpa [#allocation4], 0
    %s16 = scalar_lea.sflag [#allocation4], 1
    %17 = vsyncpa %s16, 0
    loop: start=0, step=1, limit=4
    $region2: #{tpu_custom_call.1} parent=1 // loop_pre_header
      _
    $region3: #{tpu_custom_call.1} parent=1 // loop_header
      %s19 = sphi 0, %s23
      %p20 = scmp.ge.s32.totalorder %s19, 4
      %s29 = sphi 0, %s31
      %s32 = sphi 0, %s29
      %s33 = sphi 0, %s32
      %s49 = sphi 0, %s33
      %s53 = sphi 0, %s53
      %s55 = sphi 0, %s53
      %s56 = sphi 0, %s55
      %s70 = sphi 0, %s56
      %s74 = sphi 0, %s74
      %s76 = sphi 0, %s74
      %s77 = sphi 0, %s76
      %s91 = sphi 0, %s77
      %s95 = sphi 0, %s95
      %s97 = sphi 0, %s95
      %s98 = sphi 0, %s97
      %s112 = sphi 0, %s98
      %s116 = sphi 0, %s116
      %s118 = sphi 0, %s116
      %s119 = sphi 0, %s118
      %s133 = sphi 0, %s119
      %s139 = sphi 0, %s141
      %s142 = sphi 0, %s139
      %s143 = sphi 0, %s142
      %s159 = sphi 0, %s143
    $region4: #{tpu_custom_call.1} parent=1 // loop_header_branch
      %22 = sbr.rel (%p20) target = $region8
    $region5: #{tpu_custom_call.1} parent=1 // loop_body
      %s24 = ssub.s32 %s19, 1
      %s25 = ssub.s32 %s19, 2
      %s26 = sadd.s32 %s19, 1
      %s27 = ssub.s32 %s19, %s26
      %p28 = scmp.eq.s32.totalorder %s27, 0
      %s30 = sadd.s32 %s29, 1
      %s31 = scalar_select %p28, %s29, %s30
      %p34 = pneg %p28
      %p35 = scmp.eq.s32.totalorder %s19, 1
      %p36 = por %p34, %p35
      %p37 = scmp.ne.s32.totalorder %s29, %s32
      %p38 = scmp.eq.s32.totalorder %s19, 0
      %p39 = por %p37, %p38
      %p40 = scmp.ne.s32.totalorder %s29, %s32
      %p41 = scmp.eq.s32.totalorder %s24, 1
      %p42 = por %p40, %p41
      %p43 = scmp.ne.s32.totalorder %s32, %s33
      %p44 = scmp.eq.s32.totalorder %s24, 0
      %p45 = por %p43, %p44
      %p46 = scmp.ne.s32.totalorder %s32, %s33
      %p47 = scmp.eq.s32.totalorder %s25, 1
      %p48 = por %p46, %p47
      %p50 = scmp.ne.s32.totalorder %s33, %s49
      %p51 = scmp.eq.s32.totalorder %s25, 0
      %p52 = por %p50, %p51
      %s54 = sadd.s32 %s53, 1
      %p57 = scmp.eq.s32.totalorder %s19, 1
      %p58 = scmp.ne.s32.totalorder %s53, %s55
      %p59 = scmp.eq.s32.totalorder %s19, 0
      %p60 = por %p58, %p59
      %p61 = scmp.ne.s32.totalorder %s53, %s55
      %p62 = scmp.eq.s32.totalorder %s24, 1
      %p63 = por %p61, %p62
      %p64 = scmp.ne.s32.totalorder %s55, %s56
      %p65 = scmp.eq.s32.totalorder %s24, 0
      %p66 = por %p64, %p65
      %p67 = scmp.ne.s32.totalorder %s55, %s56
      %p68 = scmp.eq.s32.totalorder %s25, 1
      %p69 = por %p67, %p68
      %p71 = scmp.ne.s32.totalorder %s56, %s70
      %p72 = scmp.eq.s32.totalorder %s25, 0
      %p73 = por %p71, %p72
      %s75 = sadd.s32 %s74, 1
      %p78 = scmp.eq.s32.totalorder %s19, 1
      %p79 = scmp.ne.s32.totalorder %s74, %s76
      %p80 = scmp.eq.s32.totalorder %s19, 0
      %p81 = por %p79, %p80
      %p82 = scmp.ne.s32.totalorder %s74, %s76
      %p83 = scmp.eq.s32.totalorder %s24, 1
      %p84 = por %p82, %p83
      %p85 = scmp.ne.s32.totalorder %s76, %s77
      %p86 = scmp.eq.s32.totalorder %s24, 0
      %p87 = por %p85, %p86
      %p88 = scmp.ne.s32.totalorder %s76, %s77
      %p89 = scmp.eq.s32.totalorder %s25, 1
      %p90 = por %p88, %p89
      %p92 = scmp.ne.s32.totalorder %s77, %s91
      %p93 = scmp.eq.s32.totalorder %s25, 0
      %p94 = por %p92, %p93
      %s96 = sadd.s32 %s95, 1
      %p99 = scmp.eq.s32.totalorder %s19, 1
      %p100 = scmp.ne.s32.totalorder %s95, %s97
      %p101 = scmp.eq.s32.totalorder %s19, 0
      %p102 = por %p100, %p101
      %p103 = scmp.ne.s32.totalorder %s95, %s97
      %p104 = scmp.eq.s32.totalorder %s24, 1
      %p105 = por %p103, %p104
      %p106 = scmp.ne.s32.totalorder %s97, %s98
      %p107 = scmp.eq.s32.totalorder %s24, 0
      %p108 = por %p106, %p107
      %p109 = scmp.ne.s32.totalorder %s97, %s98
      %p110 = scmp.eq.s32.totalorder %s25, 1
      %p111 = por %p109, %p110
      %p113 = scmp.ne.s32.totalorder %s98, %s112
      %p114 = scmp.eq.s32.totalorder %s25, 0
      %p115 = por %p113, %p114
      %s117 = sadd.s32 %s116, 1
      %p120 = scmp.eq.s32.totalorder %s19, 1
      %p121 = scmp.ne.s32.totalorder %s116, %s118
      %p122 = scmp.eq.s32.totalorder %s19, 0
      %p123 = por %p121, %p122
      %p124 = scmp.ne.s32.totalorder %s116, %s118
      %p125 = scmp.eq.s32.totalorder %s24, 1
      %p126 = por %p124, %p125
      %p127 = scmp.ne.s32.totalorder %s118, %s119
      %p128 = scmp.eq.s32.totalorder %s24, 0
      %p129 = por %p127, %p128
      %p130 = scmp.ne.s32.totalorder %s118, %s119
      %p131 = scmp.eq.s32.totalorder %s25, 1
      %p132 = por %p130, %p131
      %p134 = scmp.ne.s32.totalorder %s119, %s133
      %p135 = scmp.eq.s32.totalorder %s25, 0
      %p136 = por %p134, %p135
      %s137 = ssub.s32 %s19, %s26
      %p138 = scmp.eq.s32.totalorder %s137, 0
      %s140 = sadd.s32 %s139, 1
      %s141 = scalar_select %p138, %s139, %s140
      %p144 = pneg %p138
      %p145 = scmp.eq.s32.totalorder %s19, 1
      %p146 = por %p144, %p145
      %p147 = scmp.ne.s32.totalorder %s139, %s142
      %p148 = scmp.eq.s32.totalorder %s19, 0
      %p149 = por %p147, %p148
      %p150 = scmp.ne.s32.totalorder %s139, %s142
      %p151 = scmp.eq.s32.totalorder %s24, 1
      %p152 = por %p150, %p151
      %p153 = scmp.ne.s32.totalorder %s142, %s143
      %p154 = scmp.eq.s32.totalorder %s24, 0
      %p155 = por %p153, %p154
      %p156 = scmp.ne.s32.totalorder %s142, %s143
      %p157 = scmp.eq.s32.totalorder %s25, 1
      %p158 = por %p156, %p157
      %p160 = scmp.ne.s32.totalorder %s143, %s159
      %p161 = scmp.eq.s32.totalorder %s25, 0
      %p162 = por %p160, %p161
      %p163 = scmp.le.s32.totalorder 1, %s19
      %p164 = scmp.lt.s32.totalorder %s19, 3
      %p165 = pnand %p163, %p164
      %p166 = pneg %p165
      // Predicated region
      $region9: #{tpu_custom_call.1} parent=5 // pred_check
        _
      $region10: #{tpu_custom_call.1} parent=5 // pred_check_branch
        %168 = sbr.rel (%p165) target = $region12
      $region11: #{tpu_custom_call.1} parent=5 // pred_region
        %s169 = ssub.s32 %s19, 1
        // Predicated region
        $region13: #{tpu_custom_call.1} parent=11 // pred_check
          %p170 = pneg %p66
        $region14: #{tpu_custom_call.1} parent=11 // pred_check_branch
          %172 = sbr.rel (%p170) target = $region16
        $region15: #{tpu_custom_call.1} parent=11 // pred_region
          %174 = vsyncadd [#allocation6], 0
          %s175 = sshll.u32 %s1, 4
          %s176 = int_to_ptr.hbm [resolvable:$true] %s175
          %s177 = sshll.u32 [#allocation5], 4
          %s178 = int_to_ptr.vmem [resolvable:$true] %s177
          %183 = dma.hbm_to_vmem [thread:$0]  %s176, 512, %s178, [#allocation6], 128, 128, 8
        $region16: #{tpu_custom_call.1} parent=11 // pred_fallthru
          _
        // Predicated region
        $region17: #{tpu_custom_call.1} parent=11 // pred_check
          %p184 = pneg %p87
        $region18: #{tpu_custom_call.1} parent=11 // pred_check_branch
          %186 = sbr.rel (%p184) target = $region20
        $region19: #{tpu_custom_call.1} parent=11 // pred_region
          %188 = vsyncadd [#allocation6], 0
          %s190 = sshll.u32 %s2, 4
          %s191 = int_to_ptr.hbm [resolvable:$true] %s190
          %s192 = sshll.u32 [#allocation7], 4
          %s193 = int_to_ptr.vmem [resolvable:$true] %s192
          %195 = dma.hbm_to_vmem [thread:$0]  %s191, 32, %s193, [#allocation6]
        $region20: #{tpu_custom_call.1} parent=11 // pred_fallthru
          _
        // Predicated region
        $region21: #{tpu_custom_call.1} parent=11 // pred_check
          %p196 = pneg %p108
        $region22: #{tpu_custom_call.1} parent=11 // pred_check_branch
          %198 = sbr.rel (%p196) target = $region24
        $region23: #{tpu_custom_call.1} parent=11 // pred_region
          %200 = vsyncadd [#allocation9], 0
          %s201 = sshll.u32 %s3, 4
          %s202 = int_to_ptr.hbm [resolvable:$true] %s201
          %s203 = sshll.u32 [#allocation8], 4
          %s204 = int_to_ptr.vmem [resolvable:$true] %s203
          %209 = dma.hbm_to_vmem [thread:$0]  %s202, 4608, %s204, [#allocation9], 192, 192, 12
        $region24: #{tpu_custom_call.1} parent=11 // pred_fallthru
          _
        // Predicated region
        $region25: #{tpu_custom_call.1} parent=11 // pred_check
          %p210 = pneg %p129
        $region26: #{tpu_custom_call.1} parent=11 // pred_check_branch
          %212 = sbr.rel (%p210) target = $region28
        $region27: #{tpu_custom_call.1} parent=11 // pred_region
          _
        $region28: #{tpu_custom_call.1} parent=11 // pred_fallthru
          _
      $region12: #{tpu_custom_call.1} parent=5 // pred_fallthru
        _
      %p213 = scmp.lt.s32.totalorder %s19, 2
      // Predicated region
      $region29: #{tpu_custom_call.1} parent=5 // pred_check
        %p214 = pneg %p213
      $region30: #{tpu_custom_call.1} parent=5 // pred_check_branch
        %216 = sbr.rel (%p214) target = $region32
      $region31: #{tpu_custom_call.1} parent=5 // pred_region
        // Predicated region
        $region33: #{tpu_custom_call.1} parent=31 // pred_check
          %p217 = pneg %p39
        $region34: #{tpu_custom_call.1} parent=31 // pred_check_branch
          %219 = sbr.rel (%p217) target = $region36
        $region35: #{tpu_custom_call.1} parent=31 // pred_region
          %s220 = sand.u32 %s29, 1
          %s221 = scalar_lea.sflag [#allocation3], %s220
          %s222 = sand.u32 %s29, 1
          %s223 = smul.addr %s222, 4
          %s224 = scalar_lea.vmem [#allocation2], %s223
          %226 = vsyncadd %s221, 0
          %s227 = smul.addr %s19, 4
          %s228 = scalar_lea.hbm %s0, %s227
          %s230 = sshll.u32 %s228, 4
          %s231 = int_to_ptr.hbm [resolvable:$true] %s230
          %s232 = sshll.u32 %s224, 4
          %s233 = int_to_ptr.vmem [resolvable:$true] %s232
          %235 = dma.hbm_to_vmem [thread:$0]  %s231, 64, %s233, %s221
        $region36: #{tpu_custom_call.1} parent=31 // pred_fallthru
          _
      $region32: #{tpu_custom_call.1} parent=5 // pred_fallthru
        _
      %p236 = scmp.le.s32.totalorder 1, %s19
      %p237 = scmp.lt.s32.totalorder %s19, 3
      %p238 = pnand %p236, %p237
      %p239 = pneg %p238
      // Predicated region
      $region37: #{tpu_custom_call.1} parent=5 // pred_check
        _
      $region38: #{tpu_custom_call.1} parent=5 // pred_check_branch
        %241 = sbr.rel (%p238) target = $region40
      $region39: #{tpu_custom_call.1} parent=5 // pred_region
        %s242 = ssub.s32 %s19, 1
        %s243 = sand.u32 %s32, 1
        %s244 = scalar_lea.sflag [#allocation3], %s243
        %s245 = sand.u32 %s32, 1
        %s246 = smul.addr %s245, 4
        %s247 = scalar_lea.vmem [#allocation2], %s246
        // Predicated region
        $region41: #{tpu_custom_call.1} parent=39 // pred_check
          %p248 = pneg %p45
        $region42: #{tpu_custom_call.1} parent=39 // pred_check_branch
          %250 = sbr.rel (%p248) target = $region44
        $region43: #{tpu_custom_call.1} parent=39 // pred_region
          %252 = dma.done %s244, 64
        $region44: #{tpu_custom_call.1} parent=39 // pred_fallthru
          _
        // Predicated region
        $region45: #{tpu_custom_call.1} parent=39 // pred_check
          %p253 = pneg %p66
        $region46: #{tpu_custom_call.1} parent=39 // pred_check_branch
          %255 = sbr.rel (%p253) target = $region48
        $region47: #{tpu_custom_call.1} parent=39 // pred_region
          %257 = dma.done [#allocation6], 512
        $region48: #{tpu_custom_call.1} parent=39 // pred_fallthru
          _
        // Predicated region
        $region49: #{tpu_custom_call.1} parent=39 // pred_check
          %p258 = pneg %p87
        $region50: #{tpu_custom_call.1} parent=39 // pred_check_branch
          %260 = sbr.rel (%p258) target = $region52
        $region51: #{tpu_custom_call.1} parent=39 // pred_region
          %262 = dma.done [#allocation6], 32
        $region52: #{tpu_custom_call.1} parent=39 // pred_fallthru
          _
        // Predicated region
        $region53: #{tpu_custom_call.1} parent=39 // pred_check
          %p263 = pneg %p108
        $region54: #{tpu_custom_call.1} parent=39 // pred_check_branch
          %265 = sbr.rel (%p263) target = $region56
        $region55: #{tpu_custom_call.1} parent=39 // pred_region
          %267 = dma.done [#allocation9], 4608
        $region56: #{tpu_custom_call.1} parent=39 // pred_fallthru
          _
        %s268 = sand.u32 %s32, 1
        %s269 = scalar_lea.sflag [#allocation3], %s268
        %s270 = sand.u32 %s32, 1
        %s271 = smul.addr %s270, 4
        %s272 = scalar_lea.vmem [#allocation2], %s271
        %p273 = pneg %p45
        %p274 = pneg %p42
        %p275 = pneg %p66
        %p276 = pneg %p63
        %p277 = pneg %p87
        %p278 = pneg %p84
        %p279 = pneg %p108
        %p280 = pneg %p105
        %p281 = pneg %p129
        %p282 = pneg %p126
        %p283 = pneg %p155
        %p284 = pneg %p152
        %s285 = sand.u32 %s142, 1
        %s286 = scalar_lea.sflag [#allocation4], %s285
        %s287 = sand.u32 %s142, 1
        %s288 = smul.addr %s287, 24
        %s289 = scalar_lea.vmem [#allocation10], %s288
        %v291 = vld [vmem:[%s247] sm:$0xf]
        %v292 = vld [vmem:[#allocation5] sm:$0xff]
        %v293 = vld [vmem:[#allocation5 + $0x8] sm:$0xff]
        %v294 = vld [vmem:[#allocation5 + $0x10] sm:$0xff]
        %v295 = vld [vmem:[#allocation5 + $0x18] sm:$0xff]
        %v296 = vld [vmem:[#allocation7] sm:$0x3]
        %v298 = vperm.slane %v296, 0
        %v299 = vperm.slane %v296, 1
        %v306 = vunpack.c.l.b16 %v292
        %v307 = vunpack.c.h.b16 %v292
        %v308 = vunpack.c.l.b16 %v293
        %v309 = vunpack.c.h.b16 %v293
        %v310 = vunpack.c.l.b16 %v294
        %v311 = vunpack.c.h.b16 %v294
        %v312 = vunpack.c.l.b16 %v295
        %v313 = vunpack.c.h.b16 %v295
        %v314 = vpack.c.b16 %v308, %v306
        %v315 = vpack.c.b16 %v309, %v307
        %v316 = vpack.c.b16 %v312, %v310
        %v317 = vpack.c.b16 %v313, %v311
        %vm322 = vcmask 261120
        %v324 = vsel %vm322, %v291, 0
        %326 = vmatpush.bf16.msra.mxu0 0
        %327 = vmatpush.bf16.msra.mxu0 0
        %328 = vmatpush.bf16.msra.mxu0 0
        %329 = vmatpush.bf16.msra.mxu0 0
        %330 = vmatpush.bf16.msra.mxu0 0
        %331 = vmatpush.bf16.msra.mxu0 0
        %332 = vmatpush.bf16.msra.mxu0 %v316
        %333 = vmatpush.bf16.msra.mxu0 %v314
        %334 = vmatmul.bf16.gmra.mxu0 %v324
        %v335 = vpop.f32.mrf.mxu0
        %v336 = vadd.f32 %v298, %v335
        %v337 = vpop.f32.mrf.mxu0
        %338 = vdwg.mxu0
        %339 = vmatpush.bf16.msra.mxu0 0
        %340 = vmatpush.bf16.msra.mxu0 0
        %341 = vmatpush.bf16.msra.mxu0 0
        %342 = vmatpush.bf16.msra.mxu0 0
        %343 = vmatpush.bf16.msra.mxu0 0
        %344 = vmatpush.bf16.msra.mxu0 0
        %345 = vmatpush.bf16.msra.mxu0 %v317
        %346 = vmatpush.bf16.msra.mxu0 %v315
        %347 = vmatmul.bf16.gmra.mxu0 %v324
        %v348 = vpop.f32.mrf.mxu0
        %v349 = vadd.f32 %v299, %v348
        %v350 = vpop.f32.mrf.mxu0
        %351 = vdwg.mxu0
        %v352 = vmax.f32 %v336, 0.0
        %v353 = vmax.f32 %v349, 0.0
        %v354 = vpack.c.bf16 %v352, %v352
        %v355 = vpack.c.bf16 %v353, %v353
        %v356 = vld [vmem:[#allocation8] sm:$0xff]
        %v357 = vld [vmem:[#allocation8 + $0x8] sm:$0xf]
        %v358 = vld [vmem:[#allocation8 + $0xc] sm:$0xff]
        %v359 = vld [vmem:[#allocation8 + $0x14] sm:$0xf]
        %v360 = vld [vmem:[#allocation8 + $0x18] sm:$0xff]
        %v361 = vld [vmem:[#allocation8 + $0x20] sm:$0xf]
        %v362 = vld [vmem:[#allocation8 + $0x24] sm:$0xff]
        %v363 = vld [vmem:[#allocation8 + $0x2c] sm:$0xf]
        %v364 = vld [vmem:[#allocation8 + $0x30] sm:$0xff]
        %v365 = vld [vmem:[#allocation8 + $0x38] sm:$0xf]
        %v366 = vld [vmem:[#allocation8 + $0x3c] sm:$0xff]
        %v367 = vld [vmem:[#allocation8 + $0x44] sm:$0xf]
        %v368 = vld [vmem:[#allocation8 + $0x48] sm:$0xff]
        %v369 = vld [vmem:[#allocation8 + $0x50] sm:$0xf]
        %v370 = vld [vmem:[#allocation8 + $0x54] sm:$0xff]
        %v371 = vld [vmem:[#allocation8 + $0x5c] sm:$0xf]
        %v372 = vld [vmem:[#allocation8 + $0x60] sm:$0xff]
        %v373 = vld [vmem:[#allocation8 + $0x68] sm:$0xf]
        %v374 = vld [vmem:[#allocation8 + $0x6c] sm:$0xff]
        %v375 = vld [vmem:[#allocation8 + $0x74] sm:$0xf]
        %v376 = vld [vmem:[#allocation8 + $0x78] sm:$0xff]
        %v377 = vld [vmem:[#allocation8 + $0x80] sm:$0xf]
        %v378 = vld [vmem:[#allocation8 + $0x84] sm:$0xff]
        %v379 = vld [vmem:[#allocation8 + $0x8c] sm:$0xf]
        %v380 = vld [vmem:[#allocation8 + $0x90] sm:$0xff]
        %v381 = vld [vmem:[#allocation8 + $0x98] sm:$0xf]
        %v382 = vld [vmem:[#allocation8 + $0x9c] sm:$0xff]
        %v383 = vld [vmem:[#allocation8 + $0xa4] sm:$0xf]
        %v384 = vld [vmem:[#allocation8 + $0xa8] sm:$0xff]
        %v385 = vld [vmem:[#allocation8 + $0xb0] sm:$0xf]
        %v386 = vld [vmem:[#allocation8 + $0xb4] sm:$0xff]
        %v387 = vld [vmem:[#allocation8 + $0xbc] sm:$0xf]
        %v388 = vld [vmem:[#allocation8 + $0xc0] sm:$0xff]
        %v389 = vld [vmem:[#allocation8 + $0xc8] sm:$0xf]
        %v390 = vld [vmem:[#allocation8 + $0xcc] sm:$0xff]
        %v391 = vld [vmem:[#allocation8 + $0xd4] sm:$0xf]
        %v392 = vld [vmem:[#allocation8 + $0xd8] sm:$0xff]
        %v393 = vld [vmem:[#allocation8 + $0xe0] sm:$0xf]
        %v394 = vld [vmem:[#allocation8 + $0xe4] sm:$0xff]
        %v395 = vld [vmem:[#allocation8 + $0xec] sm:$0xf]
        %v396 = vld [vmem:[#allocation8 + $0xf0] sm:$0xff]
        %v397 = vld [vmem:[#allocation8 + $0xf8] sm:$0xf]
        %v398 = vld [vmem:[#allocation8 + $0xfc] sm:$0xff]
        %v399 = vld [vmem:[#allocation8 + $0x104] sm:$0xf]
        %v400 = vld [vmem:[#allocation8 + $0x108] sm:$0xff]
        %v401 = vld [vmem:[#allocation8 + $0x110] sm:$0xf]
        %v402 = vld [vmem:[#allocation8 + $0x114] sm:$0xff]
        %v403 = vld [vmem:[#allocation8 + $0x11c] sm:$0xf]
        %v404 = vld [vmem:[%s4] sm:$0x7]
        %v406 = vperm.slane %v404, 0
        %v407 = vperm.slane %v404, 1
        %v408 = vperm.slane %v404, 2
        %v460 = vunpack.c.l.b16 %v356
        %v461 = vunpack.c.h.b16 %v356
        %v462 = vunpack.c.l.b16 %v357
        %v463 = vunpack.c.l.b16 %v358
        %v464 = vunpack.c.h.b16 %v358
        %v465 = vunpack.c.l.b16 %v359
        %v466 = vunpack.c.l.b16 %v360
        %v467 = vunpack.c.h.b16 %v360
        %v468 = vunpack.c.l.b16 %v361
        %v469 = vunpack.c.l.b16 %v362
        %v470 = vunpack.c.h.b16 %v362
        %v471 = vunpack.c.l.b16 %v363
        %v472 = vunpack.c.l.b16 %v364
        %v473 = vunpack.c.h.b16 %v364
        %v474 = vunpack.c.l.b16 %v365
        %v475 = vunpack.c.l.b16 %v366
        %v476 = vunpack.c.h.b16 %v366
        %v477 = vunpack.c.l.b16 %v367
        %v478 = vunpack.c.l.b16 %v368
        %v479 = vunpack.c.h.b16 %v368
        %v480 = vunpack.c.l.b16 %v369
        %v481 = vunpack.c.l.b16 %v370
        %v482 = vunpack.c.h.b16 %v370
        %v483 = vunpack.c.l.b16 %v371
        %v484 = vunpack.c.l.b16 %v372
        %v485 = vunpack.c.h.b16 %v372
        %v486 = vunpack.c.l.b16 %v373
        %v487 = vunpack.c.l.b16 %v374
        %v488 = vunpack.c.h.b16 %v374
        %v489 = vunpack.c.l.b16 %v375
        %v490 = vunpack.c.l.b16 %v376
        %v491 = vunpack.c.h.b16 %v376
        %v492 = vunpack.c.l.b16 %v377
        %v493 = vunpack.c.l.b16 %v378
        %v494 = vunpack.c.h.b16 %v378
        %v495 = vunpack.c.l.b16 %v379
        %v496 = vunpack.c.l.b16 %v380
        %v497 = vunpack.c.h.b16 %v380
        %v498 = vunpack.c.l.b16 %v381
        %v499 = vunpack.c.l.b16 %v382
        %v500 = vunpack.c.h.b16 %v382
        %v501 = vunpack.c.l.b16 %v383
        %v502 = vunpack.c.l.b16 %v384
        %v503 = vunpack.c.h.b16 %v384
        %v504 = vunpack.c.l.b16 %v385
        %v505 = vunpack.c.l.b16 %v386
        %v506 = vunpack.c.h.b16 %v386
        %v507 = vunpack.c.l.b16 %v387
        %v508 = vunpack.c.l.b16 %v388
        %v509 = vunpack.c.h.b16 %v388
        %v510 = vunpack.c.l.b16 %v389
        %v511 = vunpack.c.l.b16 %v390
        %v512 = vunpack.c.h.b16 %v390
        %v513 = vunpack.c.l.b16 %v391
        %v514 = vunpack.c.l.b16 %v392
        %v515 = vunpack.c.h.b16 %v392
        %v516 = vunpack.c.l.b16 %v393
        %v517 = vunpack.c.l.b16 %v394
        %v518 = vunpack.c.h.b16 %v394
        %v519 = vunpack.c.l.b16 %v395
        %v520 = vunpack.c.l.b16 %v396
        %v521 = vunpack.c.h.b16 %v396
        %v522 = vunpack.c.l.b16 %v397
        %v523 = vunpack.c.l.b16 %v398
        %v524 = vunpack.c.h.b16 %v398
        %v525 = vunpack.c.l.b16 %v399
        %v526 = vunpack.c.l.b16 %v400
        %v527 = vunpack.c.h.b16 %v400
        %v528 = vunpack.c.l.b16 %v401
        %v529 = vunpack.c.l.b16 %v402
        %v530 = vunpack.c.h.b16 %v402
        %v531 = vunpack.c.l.b16 %v403
        %v532 = vpack.c.b16 %v463, %v460
        %v533 = vpack.c.b16 %v464, %v461
        %v534 = vpack.c.b16 %v465, %v462
        %v535 = vpack.c.b16 %v469, %v466
        %v536 = vpack.c.b16 %v470, %v467
        %v537 = vpack.c.b16 %v471, %v468
        %v538 = vpack.c.b16 %v475, %v472
        %v539 = vpack.c.b16 %v476, %v473
        %v540 = vpack.c.b16 %v477, %v474
        %v541 = vpack.c.b16 %v481, %v478
        %v542 = vpack.c.b16 %v482, %v479
        %v543 = vpack.c.b16 %v483, %v480
        %v544 = vpack.c.b16 %v487, %v484
        %v545 = vpack.c.b16 %v488, %v485
        %v546 = vpack.c.b16 %v489, %v486
        %v547 = vpack.c.b16 %v493, %v490
        %v548 = vpack.c.b16 %v494, %v491
        %v549 = vpack.c.b16 %v495, %v492
        %v550 = vpack.c.b16 %v499, %v496
        %v551 = vpack.c.b16 %v500, %v497
        %v552 = vpack.c.b16 %v501, %v498
        %v553 = vpack.c.b16 %v505, %v502
        %v554 = vpack.c.b16 %v506, %v503
        %v555 = vpack.c.b16 %v507, %v504
        %v556 = vpack.c.b16 %v511, %v508
        %v557 = vpack.c.b16 %v512, %v509
        %v558 = vpack.c.b16 %v513, %v510
        %v559 = vpack.c.b16 %v517, %v514
        %v560 = vpack.c.b16 %v518, %v515
        %v561 = vpack.c.b16 %v519, %v516
        %v562 = vpack.c.b16 %v523, %v520
        %v563 = vpack.c.b16 %v524, %v521
        %v564 = vpack.c.b16 %v525, %v522
        %v565 = vpack.c.b16 %v529, %v526
        %v566 = vpack.c.b16 %v530, %v527
        %v567 = vpack.c.b16 %v531, %v528
        %vm604 = vcmask 523264
        %v606 = vsel %vm604, %v355, 0
        %608 = vmatpush.bf16.msra.mxu0 %v553
        %609 = vmatpush.bf16.msra.mxu0 %v550
        %610 = vmatpush.bf16.msra.mxu0 %v547
        %611 = vmatpush.bf16.msra.mxu0 %v544
        %612 = vmatpush.bf16.msra.mxu0 %v541
        %613 = vmatpush.bf16.msra.mxu0 %v538
        %614 = vmatpush.bf16.msra.mxu0 %v535
        %615 = vmatpush.bf16.msra.mxu0 %v532
        %616 = vmatmul.bf16.gmra.mxu0 %v354
        %v617 = vpop.f32.mrf.mxu0
        %v618 = vadd.f32 %v406, %v617
        %v619 = vpop.f32.mrf.mxu0
        %620 = vdwg.mxu0
        %621 = vmatpush.bf16.msra.mxu0 0
        %622 = vmatpush.bf16.msra.mxu0 0
        %623 = vmatpush.bf16.msra.mxu0 0
        %624 = vmatpush.bf16.msra.mxu0 0
        %625 = vmatpush.bf16.msra.mxu0 %v565
        %626 = vmatpush.bf16.msra.mxu0 %v562
        %627 = vmatpush.bf16.msra.mxu0 %v559
        %628 = vmatpush.bf16.msra.mxu0 %v556
        %629 = vmatmul.bf16.gmra.mxu0 %v606
        %v630 = vpop.f32.mrf.mxu0
        %v631 = vadd.f32 %v618, %v630
        %v632 = vpop.f32.mrf.mxu0
        %633 = vdwg.mxu0
        %634 = vmatpush.bf16.msra.mxu0 %v554
        %635 = vmatpush.bf16.msra.mxu0 %v551
        %636 = vmatpush.bf16.msra.mxu0 %v548
        %637 = vmatpush.bf16.msra.mxu0 %v545
        %638 = vmatpush.bf16.msra.mxu0 %v542
        %639 = vmatpush.bf16.msra.mxu0 %v539
        %640 = vmatpush.bf16.msra.mxu0 %v536
        %641 = vmatpush.bf16.msra.mxu0 %v533
        %642 = vmatmul.bf16.gmra.mxu0 %v354
        %v643 = vpop.f32.mrf.mxu0
        %v644 = vadd.f32 %v407, %v643
        %v645 = vpop.f32.mrf.mxu0
        %646 = vdwg.mxu0
        %647 = vmatpush.bf16.msra.mxu0 0
        %648 = vmatpush.bf16.msra.mxu0 0
        %649 = vmatpush.bf16.msra.mxu0 0
        %650 = vmatpush.bf16.msra.mxu0 0
        %651 = vmatpush.bf16.msra.mxu0 %v566
        %652 = vmatpush.bf16.msra.mxu0 %v563
        %653 = vmatpush.bf16.msra.mxu0 %v560
        %654 = vmatpush.bf16.msra.mxu0 %v557
        %655 = vmatmul.bf16.gmra.mxu0 %v606
        %v656 = vpop.f32.mrf.mxu0
        %v657 = vadd.f32 %v644, %v656
        %v658 = vpop.f32.mrf.mxu0
        %659 = vdwg.mxu0
        %660 = vmatpush.bf16.msra.mxu0 %v555
        %661 = vmatpush.bf16.msra.mxu0 %v552
        %662 = vmatpush.bf16.msra.mxu0 %v549
        %663 = vmatpush.bf16.msra.mxu0 %v546
        %664 = vmatpush.bf16.msra.mxu0 %v543
        %665 = vmatpush.bf16.msra.mxu0 %v540
        %666 = vmatpush.bf16.msra.mxu0 %v537
        %667 = vmatpush.bf16.msra.mxu0 %v534
        %668 = vmatmul.bf16.gmra.mxu0 %v354
        %v669 = vpop.f32.mrf.mxu0
        %v670 = vadd.f32 %v408, %v669
        %v671 = vpop.f32.mrf.mxu0
        %672 = vdwg.mxu0
        %673 = vmatpush.bf16.msra.mxu0 0
        %674 = vmatpush.bf16.msra.mxu0 0
        %675 = vmatpush.bf16.msra.mxu0 0
        %676 = vmatpush.bf16.msra.mxu0 0
        %677 = vmatpush.bf16.msra.mxu0 %v567
        %678 = vmatpush.bf16.msra.mxu0 %v564
        %679 = vmatpush.bf16.msra.mxu0 %v561
        %680 = vmatpush.bf16.msra.mxu0 %v558
        %681 = vmatmul.bf16.gmra.mxu0 %v606
        %v682 = vpop.f32.mrf.mxu0
        %v683 = vadd.f32 %v670, %v682
        %v684 = vpop.f32.mrf.mxu0
        %685 = vdwg.mxu0
        %686 = vmax.xlane.f32.xlu0 %v631
        %v687 = vpop.xlane.xlu0 %686
        %v688 = vsub.f32 %v631, %v687
        %v689 = vmul.f32 %v688, 1.442695
        %v690 = vpow.pop %v689
        %691 = vadd.xlane.f32.xlu0 %v690
        %v692 = vpop.xlane.xlu0 %691
        %v693 = vrcp.pop %v692
        %v694 = vmul.f32 %v692, %v693
        %v695 = vsub.f32 1.0, %v694
        %v696 = vmul.f32 %v693, %v695
        %v697 = vadd.f32 %v693, %v696
        %vm698 = vweird.f32 %v692
        %vm699 = vweird.f32 %v693
        %vm700 = vmor %vm698, %vm699
        %v701 = vsel %vm700, %v693, %v697
        %v702 = vand.u32 2147483647, %v692
        %vm703 = vcmp.eq.f32.partialorder %v702, 8.507059e+37
        %v704 = vand.u32 %v692, 2147483648
        %v705 = vor.u32 1.1754944e-38, %v704
        %v706 = vsel %vm703, %v705, %v701
        %v707 = vmul.f32 %v690, %v706
        %708 = vst [vmem:[%s289] sm:$0xff] %v707
        %709 = vmax.xlane.f32.xlu0 %v657
        %v710 = vpop.xlane.xlu0 %709
        %v711 = vsub.f32 %v657, %v710
        %v712 = vmul.f32 %v711, 1.442695
        %v713 = vpow.pop %v712
        %714 = vadd.xlane.f32.xlu0 %v713
        %v715 = vpop.xlane.xlu0 %714
        %v716 = vrcp.pop %v715
        %v717 = vmul.f32 %v715, %v716
        %v718 = vsub.f32 1.0, %v717
        %v719 = vmul.f32 %v716, %v718
        %v720 = vadd.f32 %v716, %v719
        %vm721 = vweird.f32 %v715
        %vm722 = vweird.f32 %v716
        %vm723 = vmor %vm721, %vm722
        %v724 = vsel %vm723, %v716, %v720
        %v725 = vand.u32 2147483647, %v715
        %vm726 = vcmp.eq.f32.partialorder %v725, 8.507059e+37
        %v727 = vand.u32 %v715, 2147483648
        %v728 = vor.u32 1.1754944e-38, %v727
        %v729 = vsel %vm726, %v728, %v724
        %v730 = vmul.f32 %v713, %v729
        %s731 = scalar_lea.vmem %s289, 8 [#allocation10]
        %732 = vst [vmem:[%s731] sm:$0xff] %v730
        %733 = vmax.xlane.f32.xlu0 %v683
        %v734 = vpop.xlane.xlu0 %733
        %v735 = vsub.f32 %v683, %v734
        %v736 = vmul.f32 %v735, 1.442695
        %v737 = vpow.pop %v736
        %738 = vadd.xlane.f32.xlu0 %v737
        %v739 = vpop.xlane.xlu0 %738
        %v740 = vrcp.pop %v739
        %v741 = vmul.f32 %v739, %v740
        %v742 = vsub.f32 1.0, %v741
        %v743 = vmul.f32 %v740, %v742
        %v744 = vadd.f32 %v740, %v743
        %vm745 = vweird.f32 %v739
        %vm746 = vweird.f32 %v740
        %vm747 = vmor %vm745, %vm746
        %v748 = vsel %vm747, %v740, %v744
        %v749 = vand.u32 2147483647, %v739
        %vm750 = vcmp.eq.f32.partialorder %v749, 8.507059e+37
        %v751 = vand.u32 %v739, 2147483648
        %v752 = vor.u32 1.1754944e-38, %v751
        %v753 = vsel %vm750, %v752, %v748
        %v754 = vmul.f32 %v737, %v753
        %s755 = scalar_lea.vmem %s289, 16 [#allocation10]
        %756 = vst [vmem:[%s755] sm:$0xff] %v754
        %s757 = sand.u32 %s142, 1
        %s758 = scalar_lea.sflag [#allocation4], %s757
        %s759 = sand.u32 %s142, 1
        %s760 = smul.addr %s759, 24
        %s761 = scalar_lea.vmem [#allocation10], %s760
        // Predicated region
        $region57: #{tpu_custom_call.1} parent=39 // pred_check
          %p762 = pneg %p152
        $region58: #{tpu_custom_call.1} parent=39 // pred_check_branch
          %764 = sbr.rel (%p762) target = $region60
        $region59: #{tpu_custom_call.1} parent=39 // pred_region
          %766 = vsyncadd %s758, 0
          %s767 = smul.addr %s24, 8
          %s768 = scalar_lea.hbm %s5, %s767
          %s769 = sshll.u32 %s761, 4
          %s770 = int_to_ptr.vmem [resolvable:$true] %s769
          %s771 = sshll.u32 %s768, 4
          %s772 = int_to_ptr.hbm [resolvable:$true] %s771
          %777 = dma.vmem_to_hbm [thread:$0]  %s770, 384, %s772, %s758, 128, 256, 8
        $region60: #{tpu_custom_call.1} parent=39 // pred_fallthru
          _
      $region40: #{tpu_custom_call.1} parent=5 // pred_fallthru
        _
      %p778 = scmp.le.s32.totalorder 2, %s19
      // Predicated region
      $region61: #{tpu_custom_call.1} parent=5 // pred_check
        %p779 = pneg %p778
      $region62: #{tpu_custom_call.1} parent=5 // pred_check_branch
        %781 = sbr.rel (%p779) target = $region64
      $region63: #{tpu_custom_call.1} parent=5 // pred_region
        %s782 = ssub.s32 %s19, 2
        // Predicated region
        $region65: #{tpu_custom_call.1} parent=63 // pred_check
          %p783 = pneg %p158
        $region66: #{tpu_custom_call.1} parent=63 // pred_check_branch
          %785 = sbr.rel (%p783) target = $region68
        $region67: #{tpu_custom_call.1} parent=63 // pred_region
          %s786 = sand.u32 %s143, 1
          %s787 = scalar_lea.sflag [#allocation4], %s786
          %s788 = sand.u32 %s143, 1
          %s789 = smul.addr %s788, 24
          %s790 = scalar_lea.vmem [#allocation10], %s789
          %792 = dma.done %s787, 384
        $region68: #{tpu_custom_call.1} parent=63 // pred_fallthru
          _
      $region64: #{tpu_custom_call.1} parent=5 // pred_fallthru
        _
    $region6: #{tpu_custom_call.1} parent=1 // loop_footer
      %s23 = sadd.s32 1, %s19
    $region7: #{tpu_custom_call.1} parent=1 // loop_footer_branch
      %18 = sbr.rel target = $region3
    $region8: #{tpu_custom_call.1} parent=1 // loop_exit
      _
    %793 = vsyncpa [#allocation3], 1
    %s794 = scalar_lea.sflag [#allocation3], 1
    %795 = vsyncpa %s794, 1
    %796 = vsyncpa [#allocation6], 1
    %797 = vsyncpa [#allocation9], 1
    %798 = vsyncpa [#allocation4], 1
    %s799 = scalar_lea.sflag [#allocation4], 1
    %800 = vsyncpa %s799, 1

</llo_original>
